<compile_context>
chip_gen: v6e
topology: v6e:2x2x1
jax: 0.10.0
libtpu: 0.0.40
codegen_flags: <defaults>
</compile_context>

<pallas_src>
import jax
import jax.numpy as jnp
from jax.experimental import pallas as pl
from jax.experimental.pallas import tpu as pltpu


def adversary_kernel(x_ref, w1_ref, b1_ref, w2_ref, b2_ref,
                     w3_ref, b3_ref, w4_ref, b4_ref, out_ref):
    # x_ref: [1, tile_b]   activations computed transposed: [H, tile_b]
    x = x_ref[...].astype(jnp.float32)

    # Layer 1: in_features == 1 -> outer product on the VPU (no MXU round-trip).
    h = jnp.maximum(w1_ref[...] * x + b1_ref[...], 0.0)            # [H, tile_b]

    # Layers 2 & 3: lane-dense MXU matmuls W[H,H] @ h[H,tile_b].
    h = jnp.maximum(
        jnp.dot(w2_ref[...], h, preferred_element_type=jnp.float32) + b2_ref[...], 0.0)
    h = jnp.maximum(
        jnp.dot(w3_ref[...], h, preferred_element_type=jnp.float32) + b3_ref[...], 0.0)

    # Layer 4: W4[S,H] @ h[H,tile_b] -> [S, tile_b] stays lane-dense.
    z = jnp.dot(w4_ref[...], h, preferred_element_type=jnp.float32) + b4_ref[...]

    out_ref[...] = jax.nn.sigmoid(z).astype(out_ref.dtype)


def _pick_tile_b(B, max_tile_b=1024):
    # Whole batch in one block when it is small or not 128-aligned; otherwise the
    # largest multiple-of-128 divisor of B that is <= max_tile_b.
    if B <= max_tile_b or B % 128 != 0:
        return B
    for t in range(max_tile_b, 127, -128):
        if B % t == 0:
            return t
    return B


def adversary_forward(x, params, *, max_tile_b=1024):
    """x: [B, 1] float32; params: w1..w4 stored [out, in], b1..b4 stored [out, 1]."""
    B = x.shape[0]
    n_hidden = params["w1"].shape[0]
    n_sensitive = params["w4"].shape[0]

    tile_b = _pick_tile_b(B, max_tile_b)
    grid = (B // tile_b,)

    x_t = jnp.transpose(x.astype(jnp.float32))                     # [1, B]

    # Small weight/bias tensors: keep the full arrays resident in VMEM (no per-step
    # DMA / double buffering).
    vmem_spec = pl.BlockSpec(memory_space=pltpu.MemorySpace.VMEM)

    out_t = pl.pallas_call(
        adversary_kernel,
        out_shape=jax.ShapeDtypeStruct((n_sensitive, B), jnp.float32),
        grid_spec=pltpu.PrefetchScalarGridSpec(
            num_scalar_prefetch=0,
            grid=grid,
            in_specs=[
                pl.BlockSpec((1, tile_b), lambda i: (0, i)),        # x tile, batch on lanes
                vmem_spec,                                          # w1 [H, 1]
                vmem_spec,                                          # b1 [H, 1]
                vmem_spec,                                          # w2 [H, H]
                vmem_spec,                                          # b2 [H, 1]
                vmem_spec,                                          # w3 [H, H]
                vmem_spec,                                          # b3 [H, 1]
                vmem_spec,                                          # w4 [S, H]
                vmem_spec,                                          # b4 [S, 1]
            ],
            out_specs=pl.BlockSpec((n_sensitive, tile_b), lambda i: (0, i)),
        ),
        compiler_params=pltpu.CompilerParams(
            dimension_semantics=("parallel",),
        ),
    )(x_t, params["w1"], params["b1"], params["w2"], params["b2"],
      params["w3"], params["b3"], params["w4"], params["b4"])

    return jnp.transpose(out_t)                                     # [B, n_sensitive]


def init_params(key, n_sensitive, n_hidden=32):
    """PyTorch nn.Linear default init: uniform(-1/sqrt(fan_in), +1/sqrt(fan_in)).
    Weights stored [out, in], biases [out, 1]."""
    dims = [(n_hidden, 1), (n_hidden, n_hidden), (n_hidden, n_hidden),
            (n_sensitive, n_hidden)]
    params = {}
    for idx, (fan_out, fan_in) in enumerate(dims, start=1):
        key, kw, kb = jax.random.split(key, 3)
        bound = 1.0 / jnp.sqrt(jnp.float32(fan_in))
        params[f"w{idx}"] = jax.random.uniform(
            kw, (fan_out, fan_in), jnp.float32, minval=-bound, maxval=bound)
        params[f"b{idx}"] = jax.random.uniform(
            kb, (fan_out, 1), jnp.float32, minval=-bound, maxval=bound)
    return params


def reference_forward(x, params):
    def lin(h, w, b):
        return h @ w.T + b.reshape(1, -1)
    h = jnp.maximum(lin(x, params["w1"], params["b1"]), 0.0)
    h = jnp.maximum(lin(h, params["w2"], params["b2"]), 0.0)
    h = jnp.maximum(lin(h, params["w3"], params["b3"]), 0.0)
    z = lin(h, params["w4"], params["b4"])
    return jax.nn.sigmoid(z)


if __name__ == "__main__":
    n_sensitive = 4
    n_hidden = 32
    batch = 256          # single lane-dense block (multiple of 128)

    key = jax.random.PRNGKey(0)
    key, kx = jax.random.split(key)
    x = jax.random.normal(kx, (batch, 1), jnp.float32)
    params = init_params(key, n_sensitive, n_hidden)

    out = adversary_forward(x, params)
    out = jax.block_until_ready(out)

    ref = reference_forward(x, params)
    assert out.shape == (batch, n_sensitive)
    assert jnp.allclose(out, ref, atol=1e-5, rtol=1e-5)

    print("KERNEL_OK")
</pallas_src>

<mosaic_0001>
module attributes {stable_mosaic.version = 11 : i64} {
  func.func @adversary_kernel(%arg0: i32, %arg1: memref<1x256xf32, #tpu.memory_space<vmem>>, %arg2: memref<32x1xf32, #tpu.memory_space<vmem>>, %arg3: memref<32x1xf32, #tpu.memory_space<vmem>>, %arg4: memref<32x32xf32, #tpu.memory_space<vmem>>, %arg5: memref<32x1xf32, #tpu.memory_space<vmem>>, %arg6: memref<32x32xf32, #tpu.memory_space<vmem>>, %arg7: memref<32x1xf32, #tpu.memory_space<vmem>>, %arg8: memref<4x32xf32, #tpu.memory_space<vmem>>, %arg9: memref<4x1xf32, #tpu.memory_space<vmem>>, %arg10: memref<4x256xf32, #tpu.memory_space<vmem>>) attributes {dimension_semantics = [#tpu.dimension_semantics<parallel>], iteration_bounds = array<i64: 1>, scalar_prefetch = 0 : i64, scratch_operands = 0 : i64, tpu.core_type = #tpu.core_type<tc>, window_params = [{transform_indices = @transform_0, window_bounds = array<i64: 1, 256>}, {pipeline_mode = #tpu.pipeline_mode<synchronous>, transform_indices = @transform_1, window_bounds = array<i64: 32, 1>}, {pipeline_mode = #tpu.pipeline_mode<synchronous>, transform_indices = @transform_2, window_bounds = array<i64: 32, 1>}, {pipeline_mode = #tpu.pipeline_mode<synchronous>, transform_indices = @transform_3, window_bounds = array<i64: 32, 32>}, {pipeline_mode = #tpu.pipeline_mode<synchronous>, transform_indices = @transform_4, window_bounds = array<i64: 32, 1>}, {pipeline_mode = #tpu.pipeline_mode<synchronous>, transform_indices = @transform_5, window_bounds = array<i64: 32, 32>}, {pipeline_mode = #tpu.pipeline_mode<synchronous>, transform_indices = @transform_6, window_bounds = array<i64: 32, 1>}, {pipeline_mode = #tpu.pipeline_mode<synchronous>, transform_indices = @transform_7, window_bounds = array<i64: 4, 32>}, {pipeline_mode = #tpu.pipeline_mode<synchronous>, transform_indices = @transform_8, window_bounds = array<i64: 4, 1>}, {transform_indices = @transform_9, window_bounds = array<i64: 4, 256>}]} {
    %c0 = arith.constant 0 : index
    %c0_0 = arith.constant 0 : index
    %0 = vector.load %arg1[%c0, %c0_0] : memref<1x256xf32, #tpu.memory_space<vmem>>, vector<1x256xf32>
    %c0_1 = arith.constant 0 : index
    %c0_2 = arith.constant 0 : index
    %1 = vector.load %arg2[%c0_1, %c0_2] : memref<32x1xf32, #tpu.memory_space<vmem>>, vector<32x1xf32>
    %2 = vector.broadcast %1 : vector<32x1xf32> to vector<32x256xf32>
    %3 = vector.broadcast %0 : vector<1x256xf32> to vector<32x256xf32>
    %4 = arith.mulf %2, %3 : vector<32x256xf32>
    %c0_3 = arith.constant 0 : index
    %c0_4 = arith.constant 0 : index
    %5 = vector.load %arg3[%c0_3, %c0_4] : memref<32x1xf32, #tpu.memory_space<vmem>>, vector<32x1xf32>
    %6 = vector.broadcast %5 : vector<32x1xf32> to vector<32x256xf32>
    %7 = arith.addf %4, %6 : vector<32x256xf32>
    %cst = arith.constant 0.000000e+00 : f32
    %8 = vector.broadcast %cst : f32 to vector<32x256xf32>
    %9 = arith.maximumf %7, %8 : vector<32x256xf32>
    %c0_5 = arith.constant 0 : index
    %c0_6 = arith.constant 0 : index
    %10 = vector.load %arg4[%c0_5, %c0_6] : memref<32x32xf32, #tpu.memory_space<vmem>>, vector<32x32xf32>
    %cst_7 = arith.constant dense<0.000000e+00> : vector<32x256xf32>
    %11 = tpu.matmul %10, %9, %cst_7 {dimension_numbers = #tpu.dot_dimension_numbers<[1], [0], [0], [1], [0, 0, 1, 1], [], []>} : vector<32x32xf32>, vector<32x256xf32>, vector<32x256xf32> -> vector<32x256xf32>
    %c0_8 = arith.constant 0 : index
    %c0_9 = arith.constant 0 : index
    %12 = vector.load %arg5[%c0_8, %c0_9] : memref<32x1xf32, #tpu.memory_space<vmem>>, vector<32x1xf32>
    %13 = vector.broadcast %12 : vector<32x1xf32> to vector<32x256xf32>
    %14 = arith.addf %11, %13 : vector<32x256xf32>
    %cst_10 = arith.constant 0.000000e+00 : f32
    %15 = vector.broadcast %cst_10 : f32 to vector<32x256xf32>
    %16 = arith.maximumf %14, %15 : vector<32x256xf32>
    %c0_11 = arith.constant 0 : index
    %c0_12 = arith.constant 0 : index
    %17 = vector.load %arg6[%c0_11, %c0_12] : memref<32x32xf32, #tpu.memory_space<vmem>>, vector<32x32xf32>
    %cst_13 = arith.constant dense<0.000000e+00> : vector<32x256xf32>
    %18 = tpu.matmul %17, %16, %cst_13 {dimension_numbers = #tpu.dot_dimension_numbers<[1], [0], [0], [1], [0, 0, 1, 1], [], []>} : vector<32x32xf32>, vector<32x256xf32>, vector<32x256xf32> -> vector<32x256xf32>
    %c0_14 = arith.constant 0 : index
    %c0_15 = arith.constant 0 : index
    %19 = vector.load %arg7[%c0_14, %c0_15] : memref<32x1xf32, #tpu.memory_space<vmem>>, vector<32x1xf32>
    %20 = vector.broadcast %19 : vector<32x1xf32> to vector<32x256xf32>
    %21 = arith.addf %18, %20 : vector<32x256xf32>
    %cst_16 = arith.constant 0.000000e+00 : f32
    %22 = vector.broadcast %cst_16 : f32 to vector<32x256xf32>
    %23 = arith.maximumf %21, %22 : vector<32x256xf32>
    %c0_17 = arith.constant 0 : index
    %c0_18 = arith.constant 0 : index
    %24 = vector.load %arg8[%c0_17, %c0_18] : memref<4x32xf32, #tpu.memory_space<vmem>>, vector<4x32xf32>
    %cst_19 = arith.constant dense<0.000000e+00> : vector<4x256xf32>
    %25 = tpu.matmul %24, %23, %cst_19 {dimension_numbers = #tpu.dot_dimension_numbers<[1], [0], [0], [1], [0, 0, 1, 1], [], []>} : vector<4x32xf32>, vector<32x256xf32>, vector<4x256xf32> -> vector<4x256xf32>
    %c0_20 = arith.constant 0 : index
    %c0_21 = arith.constant 0 : index
    %26 = vector.load %arg9[%c0_20, %c0_21] : memref<4x1xf32, #tpu.memory_space<vmem>>, vector<4x1xf32>
    %27 = vector.broadcast %26 : vector<4x1xf32> to vector<4x256xf32>
    %28 = arith.addf %25, %27 : vector<4x256xf32>
    %29 = arith.negf %28 : vector<4x256xf32>
    %30 = math.exp %29 : vector<4x256xf32>
    %cst_22 = arith.constant 1.000000e+00 : f32
    %31 = vector.broadcast %cst_22 : f32 to vector<4x256xf32>
    %32 = arith.addf %31, %30 : vector<4x256xf32>
    %33 = arith.divf %31, %32 : vector<4x256xf32>
    %c0_23 = arith.constant 0 : index
    %c0_24 = arith.constant 0 : index
    %34 = vector.load %arg10[%c0_23, %c0_24] : memref<4x256xf32, #tpu.memory_space<vmem>>, vector<4x256xf32>
    tpu.vector_store %arg10[%c0_23, %c0_24], %33 {strides = array<i32>} : memref<4x256xf32, #tpu.memory_space<vmem>>, vector<4x256xf32>,
    return
  }
  func.func @transform_0(%arg0: i32) -> (i32, i32) {
    %c0_i32 = arith.constant 0 : i32
    %c0_i32_0 = arith.constant 0 : i32
    return %c0_i32, %arg0 : i32, i32
  }
  func.func @transform_1(%arg0: i32) -> (i32, i32) {
    %c0_i32 = arith.constant 0 : i32
    %c0_i32_0 = arith.constant 0 : i32
    %c0_i32_1 = arith.constant 0 : i32
    return %c0_i32, %c0_i32_0 : i32, i32
  }
  func.func @transform_2(%arg0: i32) -> (i32, i32) {
    %c0_i32 = arith.constant 0 : i32
    %c0_i32_0 = arith.constant 0 : i32
    %c0_i32_1 = arith.constant 0 : i32
    return %c0_i32, %c0_i32_0 : i32, i32
  }
  func.func @transform_3(%arg0: i32) -> (i32, i32) {
    %c0_i32 = arith.constant 0 : i32
    %c0_i32_0 = arith.constant 0 : i32
    %c0_i32_1 = arith.constant 0 : i32
    return %c0_i32, %c0_i32_0 : i32, i32
  }
  func.func @transform_4(%arg0: i32) -> (i32, i32) {
    %c0_i32 = arith.constant 0 : i32
    %c0_i32_0 = arith.constant 0 : i32
    %c0_i32_1 = arith.constant 0 : i32
    return %c0_i32, %c0_i32_0 : i32, i32
  }
  func.func @transform_5(%arg0: i32) -> (i32, i32) {
    %c0_i32 = arith.constant 0 : i32
    %c0_i32_0 = arith.constant 0 : i32
    %c0_i32_1 = arith.constant 0 : i32
    return %c0_i32, %c0_i32_0 : i32, i32
  }
  func.func @transform_6(%arg0: i32) -> (i32, i32) {
    %c0_i32 = arith.constant 0 : i32
    %c0_i32_0 = arith.constant 0 : i32
    %c0_i32_1 = arith.constant 0 : i32
    return %c0_i32, %c0_i32_0 : i32, i32
  }
  func.func @transform_7(%arg0: i32) -> (i32, i32) {
    %c0_i32 = arith.constant 0 : i32
    %c0_i32_0 = arith.constant 0 : i32
    %c0_i32_1 = arith.constant 0 : i32
    return %c0_i32, %c0_i32_0 : i32, i32
  }
  func.func @transform_8(%arg0: i32) -> (i32, i32) {
    %c0_i32 = arith.constant 0 : i32
    %c0_i32_0 = arith.constant 0 : i32
    %c0_i32_1 = arith.constant 0 : i32
    return %c0_i32, %c0_i32_0 : i32, i32
  }
  func.func @transform_9(%arg0: i32) -> (i32, i32) {
    %c0_i32 = arith.constant 0 : i32
    %c0_i32_0 = arith.constant 0 : i32
    return %c0_i32, %arg0 : i32, i32
  }
}

</mosaic_0001>

<llo_original>
// kernel: tpu_custom_call.1
$region0: #{tpu_custom_call.1}
  #allocation0 [shape = 'u32[]', space=smem, size = 0x4, offset = 0x4, fixed_abs, tag = 'smem constant byte address 0x4 - core index']
  #allocation1 [shape = 'u32[144,128]{1,0:T(1,128)}', space=vmem, size = 0x12000, scoped, tag = 'internal scratch']
  %s0 = inlined_call_operand.vmem [shape: f32[1,256], index: 0, kind: input, shape index: {}]
  %s1 = inlined_call_operand.vmem [shape: f32[32,1], index: 1, kind: input, shape index: {}]
  %s2 = inlined_call_operand.vmem [shape: f32[32,1], index: 2, kind: input, shape index: {}]
  %s3 = inlined_call_operand.vmem [shape: f32[32,32], index: 3, kind: input, shape index: {}]
  %s4 = inlined_call_operand.vmem [shape: f32[32,1], index: 4, kind: input, shape index: {}]
  %s5 = inlined_call_operand.vmem [shape: f32[32,32], index: 5, kind: input, shape index: {}]
  %s6 = inlined_call_operand.vmem [shape: f32[32,1], index: 6, kind: input, shape index: {}]
  %s7 = inlined_call_operand.vmem [shape: f32[4,32], index: 7, kind: input, shape index: {}]
  %s8 = inlined_call_operand.vmem [shape: f32[4,1], index: 8, kind: input, shape index: {}]
  %s9 = inlined_call_operand.hbm [shape: f32[4,256], index: 9, kind: output, shape index: {}]
  %s10 = sld [smem:[#allocation0]]
  $region46: #{tpu_custom_call.1} parent=0
    _
  %s12 = ssub.s32 1, %s10
  %s13 = scalar_select 0, %s12, %s10
  $region1: #{tpu_custom_call.1} parent=0
    #allocation2 [shape = 'u8[4096]{0}', space=vmem, size = 0x1000, scoped, tag = 'output window, operand 0, single buffered']
    #allocation3 [shape = 's32[1]{0}', space=sflag, size = 0x4, scoped, tag = 'scoped memory for tpu_custom_call.1']
    %14 = vsyncpa [#allocation3], 0
    // Predicated region
    $region2: #{tpu_custom_call.1} parent=1 // pred_check
      _
    $region3: #{tpu_custom_call.1} parent=1 // pred_check_branch
      %16 = sbr.rel (0) target = $region5
    $region4: #{tpu_custom_call.1} parent=1 // pred_region
      _
    $region5: #{tpu_custom_call.1} parent=1 // pred_fallthru
      _
    // Predicated region
    $region6: #{tpu_custom_call.1} parent=1 // pred_check
      _
    $region7: #{tpu_custom_call.1} parent=1 // pred_check_branch
      %18 = sbr.rel (0) target = $region9
    $region8: #{tpu_custom_call.1} parent=1 // pred_region
      _
    $region9: #{tpu_custom_call.1} parent=1 // pred_fallthru
      _
    // Predicated region
    $region10: #{tpu_custom_call.1} parent=1 // pred_check
      _
    $region11: #{tpu_custom_call.1} parent=1 // pred_check_branch
      %20 = sbr.rel (0) target = $region13
    $region12: #{tpu_custom_call.1} parent=1 // pred_region
      _
    $region13: #{tpu_custom_call.1} parent=1 // pred_fallthru
      _
    // Predicated region
    $region14: #{tpu_custom_call.1} parent=1 // pred_check
      _
    $region15: #{tpu_custom_call.1} parent=1 // pred_check_branch
      %22 = sbr.rel (0) target = $region17
    $region16: #{tpu_custom_call.1} parent=1 // pred_region
      _
    $region17: #{tpu_custom_call.1} parent=1 // pred_fallthru
      _
    // Predicated region
    $region18: #{tpu_custom_call.1} parent=1 // pred_check
      _
    $region19: #{tpu_custom_call.1} parent=1 // pred_check_branch
      %24 = sbr.rel (0) target = $region21
    $region20: #{tpu_custom_call.1} parent=1 // pred_region
      _
    $region21: #{tpu_custom_call.1} parent=1 // pred_fallthru
      _
    // Predicated region
    $region22: #{tpu_custom_call.1} parent=1 // pred_check
      _
    $region23: #{tpu_custom_call.1} parent=1 // pred_check_branch
      %26 = sbr.rel (0) target = $region25
    $region24: #{tpu_custom_call.1} parent=1 // pred_region
      _
    $region25: #{tpu_custom_call.1} parent=1 // pred_fallthru
      _
    // Predicated region
    $region26: #{tpu_custom_call.1} parent=1 // pred_check
      _
    $region27: #{tpu_custom_call.1} parent=1 // pred_check_branch
      %28 = sbr.rel (0) target = $region29
    $region28: #{tpu_custom_call.1} parent=1 // pred_region
      _
    $region29: #{tpu_custom_call.1} parent=1 // pred_fallthru
      _
    // Predicated region
    $region30: #{tpu_custom_call.1} parent=1 // pred_check
      _
    $region31: #{tpu_custom_call.1} parent=1 // pred_check_branch
      %30 = sbr.rel (0) target = $region33
    $region32: #{tpu_custom_call.1} parent=1 // pred_region
      _
    $region33: #{tpu_custom_call.1} parent=1 // pred_fallthru
      _
    // Predicated region
    $region34: #{tpu_custom_call.1} parent=1 // pred_check
      _
    $region35: #{tpu_custom_call.1} parent=1 // pred_check_branch
      %32 = sbr.rel (0) target = $region37
    $region36: #{tpu_custom_call.1} parent=1 // pred_region
      _
    $region37: #{tpu_custom_call.1} parent=1 // pred_fallthru
      _
    %v33 = vld [vmem:[%s0] sm:$0x3]
    %v34 = vld [vmem:[%s1] sm:$0xff]
    %v35 = vld [vmem:[%s1 + $0x8] sm:$0xff]
    %v36 = vld [vmem:[%s1 + $0x10] sm:$0xff]
    %v37 = vld [vmem:[%s1 + $0x18] sm:$0xff]
    %39 = vset.pattern.permute.xlu0 0
    %40 = vperm.xlu0 %39, %v34
    %v41 = vpop.permute.xlu0 %40
    %44 = vset.pattern.permute.xlu0 0
    %45 = vperm.xlu0 %44, %v35
    %v46 = vpop.permute.xlu0 %45
    %49 = vset.pattern.permute.xlu0 0
    %50 = vperm.xlu0 %49, %v36
    %v51 = vpop.permute.xlu0 %50
    %54 = vset.pattern.permute.xlu0 0
    %55 = vperm.xlu0 %54, %v37
    %v56 = vpop.permute.xlu0 %55
    %v59 = vlaneseq
    %v60 = vshrl.u32 %v59, 7
    %v61 = vsub.s32 0, %v60
    %v62 = vrot.slane %v33, %v61
    %v63 = vlaneseq
    %v64 = vshrl.u32 %v63, 7
    %v65 = vsub.s32 1, %v64
    %v66 = vrot.slane %v33, %v65
    %v69 = vmul.f32 %v41, %v62
    %v70 = vmul.f32 %v41, %v66
    %v71 = vmul.f32 %v46, %v62
    %v72 = vmul.f32 %v46, %v66
    %v73 = vmul.f32 %v51, %v62
    %v74 = vmul.f32 %v51, %v66
    %v75 = vmul.f32 %v56, %v62
    %v76 = vmul.f32 %v56, %v66
    %v77 = vld [vmem:[%s2] sm:$0xff]
    %v78 = vld [vmem:[%s2 + $0x8] sm:$0xff]
    %v79 = vld [vmem:[%s2 + $0x10] sm:$0xff]
    %v80 = vld [vmem:[%s2 + $0x18] sm:$0xff]
    %82 = vset.pattern.permute.xlu0 0
    %83 = vperm.xlu0 %82, %v77
    %v84 = vpop.permute.xlu0 %83
    %87 = vset.pattern.permute.xlu0 0
    %88 = vperm.xlu0 %87, %v78
    %v89 = vpop.permute.xlu0 %88
    %92 = vset.pattern.permute.xlu0 0
    %93 = vperm.xlu0 %92, %v79
    %v94 = vpop.permute.xlu0 %93
    %97 = vset.pattern.permute.xlu0 0
    %98 = vperm.xlu0 %97, %v80
    %v99 = vpop.permute.xlu0 %98
    %v101 = vadd.f32 %v69, %v84
    %v102 = vadd.f32 %v70, %v84
    %v103 = vadd.f32 %v71, %v89
    %v104 = vadd.f32 %v72, %v89
    %v105 = vadd.f32 %v73, %v94
    %v106 = vadd.f32 %v74, %v94
    %v107 = vadd.f32 %v75, %v99
    %v108 = vadd.f32 %v76, %v99
    %v109 = vmax.f32 %v101, 0.0
    %v110 = vmax.f32 %v102, 0.0
    %v111 = vmax.f32 %v103, 0.0
    %v112 = vmax.f32 %v104, 0.0
    %v113 = vmax.f32 %v105, 0.0
    %v114 = vmax.f32 %v106, 0.0
    %v115 = vmax.f32 %v107, 0.0
    %v116 = vmax.f32 %v108, 0.0
    %v117 = vld [vmem:[%s3] sm:$0xff]
    %v118 = vld [vmem:[%s3 + $0x8] sm:$0xff]
    %v119 = vld [vmem:[%s3 + $0x10] sm:$0xff]
    %v120 = vld [vmem:[%s3 + $0x18] sm:$0xff]
    %v121 = vld [vmem:[%s4] sm:$0xff]
    %v122 = vld [vmem:[%s4 + $0x8] sm:$0xff]
    %v123 = vld [vmem:[%s4 + $0x10] sm:$0xff]
    %v124 = vld [vmem:[%s4 + $0x18] sm:$0xff]
    %126 = vset.pattern.permute.xlu0 0
    %127 = vperm.xlu0 %126, %v121
    %v128 = vpop.permute.xlu0 %127
    %131 = vset.pattern.permute.xlu0 0
    %132 = vperm.xlu0 %131, %v122
    %v133 = vpop.permute.xlu0 %132
    %136 = vset.pattern.permute.xlu0 0
    %137 = vperm.xlu0 %136, %v123
    %v138 = vpop.permute.xlu0 %137
    %141 = vset.pattern.permute.xlu0 0
    %142 = vperm.xlu0 %141, %v124
    %v143 = vpop.permute.xlu0 %142
    %vm145 = vcmask 261120
    %v147 = vsel %vm145, %v117, 0
    %v150 = vsel %vm145, %v118, 0
    %v153 = vsel %vm145, %v119, 0
    %v156 = vsel %vm145, %v120, 0
    %158 = vmatprep.subr.mxu0 0.0
    %159 = vmatpush1.msra.mxu0 0.0
    %160 = vmatprep.subr.mxu0 0.0
    %161 = vmatpush1.msra.mxu0 0.0
    %162 = vmatprep.subr.mxu0 0.0
    %163 = vmatpush1.msra.mxu0 0.0
    %164 = vmatprep.subr.mxu0 0.0
    %165 = vmatpush1.msra.mxu0 0.0
    %166 = vmatprep.subr.mxu0 0.0
    %167 = vmatpush1.msra.mxu0 0.0
    %168 = vmatprep.subr.mxu0 0.0
    %169 = vmatpush1.msra.mxu0 0.0
    %170 = vmatprep.subr.mxu0 0.0
    %171 = vmatpush1.msra.mxu0 0.0
    %172 = vmatprep.subr.mxu0 0.0
    %173 = vmatpush1.msra.mxu0 0.0
    %174 = vmatprep.subr.mxu0 0.0
    %175 = vmatpush1.msra.mxu0 0.0
    %176 = vmatprep.subr.mxu0 0.0
    %177 = vmatpush1.msra.mxu0 0.0
    %178 = vmatprep.subr.mxu0 0.0
    %179 = vmatpush1.msra.mxu0 0.0
    %180 = vmatprep.subr.mxu0 0.0
    %181 = vmatpush1.msra.mxu0 0.0
    %182 = vmatprep.subr.mxu0 %v116
    %183 = vmatpush1.msra.mxu0 %v115
    %184 = vmatprep.subr.mxu0 %v114
    %185 = vmatpush1.msra.mxu0 %v113
    %186 = vmatprep.subr.mxu0 %v112
    %187 = vmatpush1.msra.mxu0 %v111
    %188 = vmatprep.subr.mxu0 %v110
    %189 = vmatpush1.msra.mxu0 %v109
    %190 = vmatprep.subr.mxu0 0.0
    %191 = vmatpush2.msra.mxu0 0.0
    %192 = vmatprep.subr.mxu0 0.0
    %193 = vmatpush2.msra.mxu0 0.0
    %194 = vmatprep.subr.mxu0 0.0
    %195 = vmatpush2.msra.mxu0 0.0
    %196 = vmatprep.subr.mxu0 0.0
    %197 = vmatpush2.msra.mxu0 0.0
    %198 = vmatprep.subr.mxu0 0.0
    %199 = vmatpush2.msra.mxu0 0.0
    %200 = vmatprep.subr.mxu0 0.0
    %201 = vmatpush2.msra.mxu0 0.0
    %202 = vmatprep.subr.mxu0 0.0
    %203 = vmatpush2.msra.mxu0 0.0
    %204 = vmatprep.subr.mxu0 0.0
    %205 = vmatpush2.msra.mxu0 0.0
    %206 = vmatprep.subr.mxu0 0.0
    %207 = vmatpush2.msra.mxu0 0.0
    %208 = vmatprep.subr.mxu0 0.0
    %209 = vmatpush2.msra.mxu0 0.0
    %210 = vmatprep.subr.mxu0 0.0
    %211 = vmatpush2.msra.mxu0 0.0
    %212 = vmatprep.subr.mxu0 0.0
    %213 = vmatpush2.msra.mxu0 0.0
    %214 = vmatprep.subr.mxu0 0.0
    %215 = vmatpush2.msra.mxu0 0.0
    %216 = vmatprep.subr.mxu0 0.0
    %217 = vmatpush2.msra.mxu0 0.0
    %218 = vmatprep.subr.mxu0 0.0
    %219 = vmatpush2.msra.mxu0 0.0
    %220 = vmatprep.subr.mxu0 0.0
    %221 = vmatpush2.msra.mxu0 0.0
    %222 = vmatprep.mubr.f32.mxu0 0.0
    %223 = vmatmul.mubr.f32.gmra.mxu0 %v147
    %v224 = vpop.f32.mrf.mxu0
    %v225 = vadd.f32 %v128, %v224
    %v226 = vpop.f32.mrf.mxu0
    %v227 = vadd.f32 %v128, %v226
    %228 = vmatprep.mubr.f32.mxu0 0.0
    %229 = vmatmul.mubr.f32.gmra.mxu0 %v150
    %v230 = vpop.f32.mrf.mxu0
    %v231 = vadd.f32 %v133, %v230
    %v232 = vpop.f32.mrf.mxu0
    %v233 = vadd.f32 %v133, %v232
    %234 = vmatprep.mubr.f32.mxu0 0.0
    %235 = vmatmul.mubr.f32.gmra.mxu0 %v153
    %v236 = vpop.f32.mrf.mxu0
    %v237 = vadd.f32 %v138, %v236
    %v238 = vpop.f32.mrf.mxu0
    %v239 = vadd.f32 %v138, %v238
    %240 = vmatprep.mubr.f32.mxu0 0.0
    %241 = vmatmul.mubr.f32.gmra.mxu0 %v156
    %v242 = vpop.f32.mrf.mxu0
    %v243 = vadd.f32 %v143, %v242
    %v244 = vpop.f32.mrf.mxu0
    %v245 = vadd.f32 %v143, %v244
    %246 = vdwg.mxu0
    %v247 = vmax.f32 %v225, 0.0
    %v248 = vmax.f32 %v227, 0.0
    %v249 = vmax.f32 %v231, 0.0
    %v250 = vmax.f32 %v233, 0.0
    %v251 = vmax.f32 %v237, 0.0
    %v252 = vmax.f32 %v239, 0.0
    %v253 = vmax.f32 %v243, 0.0
    %v254 = vmax.f32 %v245, 0.0
    %v255 = vld [vmem:[%s5] sm:$0xff]
    %v256 = vld [vmem:[%s5 + $0x8] sm:$0xff]
    %v257 = vld [vmem:[%s5 + $0x10] sm:$0xff]
    %v258 = vld [vmem:[%s5 + $0x18] sm:$0xff]
    %v259 = vld [vmem:[%s6] sm:$0xff]
    %v260 = vld [vmem:[%s6 + $0x8] sm:$0xff]
    %v261 = vld [vmem:[%s6 + $0x10] sm:$0xff]
    %v262 = vld [vmem:[%s6 + $0x18] sm:$0xff]
    %264 = vset.pattern.permute.xlu0 0
    %265 = vperm.xlu0 %264, %v259
    %v266 = vpop.permute.xlu0 %265
    %269 = vset.pattern.permute.xlu0 0
    %270 = vperm.xlu0 %269, %v260
    %v271 = vpop.permute.xlu0 %270
    %274 = vset.pattern.permute.xlu0 0
    %275 = vperm.xlu0 %274, %v261
    %v276 = vpop.permute.xlu0 %275
    %279 = vset.pattern.permute.xlu0 0
    %280 = vperm.xlu0 %279, %v262
    %v281 = vpop.permute.xlu0 %280
    %v284 = vsel %vm145, %v255, 0
    %v287 = vsel %vm145, %v256, 0
    %v290 = vsel %vm145, %v257, 0
    %v293 = vsel %vm145, %v258, 0
    %295 = vmatprep.subr.mxu0 0.0
    %296 = vmatpush1.msra.mxu0 0.0
    %297 = vmatprep.subr.mxu0 0.0
    %298 = vmatpush1.msra.mxu0 0.0
    %299 = vmatprep.subr.mxu0 0.0
    %300 = vmatpush1.msra.mxu0 0.0
    %301 = vmatprep.subr.mxu0 0.0
    %302 = vmatpush1.msra.mxu0 0.0
    %303 = vmatprep.subr.mxu0 0.0
    %304 = vmatpush1.msra.mxu0 0.0
    %305 = vmatprep.subr.mxu0 0.0
    %306 = vmatpush1.msra.mxu0 0.0
    %307 = vmatprep.subr.mxu0 0.0
    %308 = vmatpush1.msra.mxu0 0.0
    %309 = vmatprep.subr.mxu0 0.0
    %310 = vmatpush1.msra.mxu0 0.0
    %311 = vmatprep.subr.mxu0 0.0
    %312 = vmatpush1.msra.mxu0 0.0
    %313 = vmatprep.subr.mxu0 0.0
    %314 = vmatpush1.msra.mxu0 0.0
    %315 = vmatprep.subr.mxu0 0.0
    %316 = vmatpush1.msra.mxu0 0.0
    %317 = vmatprep.subr.mxu0 0.0
    %318 = vmatpush1.msra.mxu0 0.0
    %319 = vmatprep.subr.mxu0 %v254
    %320 = vmatpush1.msra.mxu0 %v253
    %321 = vmatprep.subr.mxu0 %v252
    %322 = vmatpush1.msra.mxu0 %v251
    %323 = vmatprep.subr.mxu0 %v250
    %324 = vmatpush1.msra.mxu0 %v249
    %325 = vmatprep.subr.mxu0 %v248
    %326 = vmatpush1.msra.mxu0 %v247
    %327 = vmatprep.subr.mxu0 0.0
    %328 = vmatpush2.msra.mxu0 0.0
    %329 = vmatprep.subr.mxu0 0.0
    %330 = vmatpush2.msra.mxu0 0.0
    %331 = vmatprep.subr.mxu0 0.0
    %332 = vmatpush2.msra.mxu0 0.0
    %333 = vmatprep.subr.mxu0 0.0
    %334 = vmatpush2.msra.mxu0 0.0
    %335 = vmatprep.subr.mxu0 0.0
    %336 = vmatpush2.msra.mxu0 0.0
    %337 = vmatprep.subr.mxu0 0.0
    %338 = vmatpush2.msra.mxu0 0.0
    %339 = vmatprep.subr.mxu0 0.0
    %340 = vmatpush2.msra.mxu0 0.0
    %341 = vmatprep.subr.mxu0 0.0
    %342 = vmatpush2.msra.mxu0 0.0
    %343 = vmatprep.subr.mxu0 0.0
    %344 = vmatpush2.msra.mxu0 0.0
    %345 = vmatprep.subr.mxu0 0.0
    %346 = vmatpush2.msra.mxu0 0.0
    %347 = vmatprep.subr.mxu0 0.0
    %348 = vmatpush2.msra.mxu0 0.0
    %349 = vmatprep.subr.mxu0 0.0
    %350 = vmatpush2.msra.mxu0 0.0
    %351 = vmatprep.subr.mxu0 0.0
    %352 = vmatpush2.msra.mxu0 0.0
    %353 = vmatprep.subr.mxu0 0.0
    %354 = vmatpush2.msra.mxu0 0.0
    %355 = vmatprep.subr.mxu0 0.0
    %356 = vmatpush2.msra.mxu0 0.0
    %357 = vmatprep.subr.mxu0 0.0
    %358 = vmatpush2.msra.mxu0 0.0
    %359 = vmatprep.mubr.f32.mxu0 0.0
    %360 = vmatmul.mubr.f32.gmra.mxu0 %v284
    %v361 = vpop.f32.mrf.mxu0
    %v362 = vadd.f32 %v266, %v361
    %v363 = vpop.f32.mrf.mxu0
    %v364 = vadd.f32 %v266, %v363
    %365 = vmatprep.mubr.f32.mxu0 0.0
    %366 = vmatmul.mubr.f32.gmra.mxu0 %v287
    %v367 = vpop.f32.mrf.mxu0
    %v368 = vadd.f32 %v271, %v367
    %v369 = vpop.f32.mrf.mxu0
    %v370 = vadd.f32 %v271, %v369
    %371 = vmatprep.mubr.f32.mxu0 0.0
    %372 = vmatmul.mubr.f32.gmra.mxu0 %v290
    %v373 = vpop.f32.mrf.mxu0
    %v374 = vadd.f32 %v276, %v373
    %v375 = vpop.f32.mrf.mxu0
    %v376 = vadd.f32 %v276, %v375
    %377 = vmatprep.mubr.f32.mxu0 0.0
    %378 = vmatmul.mubr.f32.gmra.mxu0 %v293
    %v379 = vpop.f32.mrf.mxu0
    %v380 = vadd.f32 %v281, %v379
    %v381 = vpop.f32.mrf.mxu0
    %v382 = vadd.f32 %v281, %v381
    %383 = vdwg.mxu0
    %v384 = vmax.f32 %v362, 0.0
    %v385 = vmax.f32 %v364, 0.0
    %v386 = vmax.f32 %v368, 0.0
    %v387 = vmax.f32 %v370, 0.0
    %v388 = vmax.f32 %v374, 0.0
    %v389 = vmax.f32 %v376, 0.0
    %v390 = vmax.f32 %v380, 0.0
    %v391 = vmax.f32 %v382, 0.0
    %v392 = vld [vmem:[%s7] sm:$0xf]
    %v393 = vld [vmem:[%s8] sm:$0xf]
    %395 = vset.pattern.permute.xlu0 0
    %396 = vperm.xlu0 %395, %v393
    %v397 = vpop.permute.xlu0 %396
    %v400 = vsel %vm145, %v392, 0
    %402 = vmatprep.subr.mxu0 0.0
    %403 = vmatpush1.msra.mxu0 0.0
    %404 = vmatprep.subr.mxu0 0.0
    %405 = vmatpush1.msra.mxu0 0.0
    %406 = vmatprep.subr.mxu0 0.0
    %407 = vmatpush1.msra.mxu0 0.0
    %408 = vmatprep.subr.mxu0 0.0
    %409 = vmatpush1.msra.mxu0 0.0
    %410 = vmatprep.subr.mxu0 0.0
    %411 = vmatpush1.msra.mxu0 0.0
    %412 = vmatprep.subr.mxu0 0.0
    %413 = vmatpush1.msra.mxu0 0.0
    %414 = vmatprep.subr.mxu0 0.0
    %415 = vmatpush1.msra.mxu0 0.0
    %416 = vmatprep.subr.mxu0 0.0
    %417 = vmatpush1.msra.mxu0 0.0
    %418 = vmatprep.subr.mxu0 0.0
    %419 = vmatpush1.msra.mxu0 0.0
    %420 = vmatprep.subr.mxu0 0.0
    %421 = vmatpush1.msra.mxu0 0.0
    %422 = vmatprep.subr.mxu0 0.0
    %423 = vmatpush1.msra.mxu0 0.0
    %424 = vmatprep.subr.mxu0 0.0
    %425 = vmatpush1.msra.mxu0 0.0
    %426 = vmatprep.subr.mxu0 %v391
    %427 = vmatpush1.msra.mxu0 %v390
    %428 = vmatprep.subr.mxu0 %v389
    %429 = vmatpush1.msra.mxu0 %v388
    %430 = vmatprep.subr.mxu0 %v387
    %431 = vmatpush1.msra.mxu0 %v386
    %432 = vmatprep.subr.mxu0 %v385
    %433 = vmatpush1.msra.mxu0 %v384
    %434 = vmatprep.subr.mxu0 0.0
    %435 = vmatpush2.msra.mxu0 0.0
    %436 = vmatprep.subr.mxu0 0.0
    %437 = vmatpush2.msra.mxu0 0.0
    %438 = vmatprep.subr.mxu0 0.0
    %439 = vmatpush2.msra.mxu0 0.0
    %440 = vmatprep.subr.mxu0 0.0
    %441 = vmatpush2.msra.mxu0 0.0
    %442 = vmatprep.subr.mxu0 0.0
    %443 = vmatpush2.msra.mxu0 0.0
    %444 = vmatprep.subr.mxu0 0.0
    %445 = vmatpush2.msra.mxu0 0.0
    %446 = vmatprep.subr.mxu0 0.0
    %447 = vmatpush2.msra.mxu0 0.0
    %448 = vmatprep.subr.mxu0 0.0
    %449 = vmatpush2.msra.mxu0 0.0
    %450 = vmatprep.subr.mxu0 0.0
    %451 = vmatpush2.msra.mxu0 0.0
    %452 = vmatprep.subr.mxu0 0.0
    %453 = vmatpush2.msra.mxu0 0.0
    %454 = vmatprep.subr.mxu0 0.0
    %455 = vmatpush2.msra.mxu0 0.0
    %456 = vmatprep.subr.mxu0 0.0
    %457 = vmatpush2.msra.mxu0 0.0
    %458 = vmatprep.subr.mxu0 0.0
    %459 = vmatpush2.msra.mxu0 0.0
    %460 = vmatprep.subr.mxu0 0.0
    %461 = vmatpush2.msra.mxu0 0.0
    %462 = vmatprep.subr.mxu0 0.0
    %463 = vmatpush2.msra.mxu0 0.0
    %464 = vmatprep.subr.mxu0 0.0
    %465 = vmatpush2.msra.mxu0 0.0
    %466 = vmatprep.mubr.f32.mxu0 0.0
    %467 = vmatmul.mubr.f32.gmra.mxu0 %v400
    %v468 = vpop.f32.mrf.mxu0
    %v469 = vadd.f32 %v397, %v468
    %v470 = vpop.f32.mrf.mxu0
    %v471 = vadd.f32 %v397, %v470
    %472 = vdwg.mxu0
    %v473 = vxor.u32 %v469, 2147483648
    %v474 = vxor.u32 %v471, 2147483648
    %v475 = vmul.f32 %v473, 1.442695
    %v476 = vpow.pop %v475
    %v477 = vmul.f32 %v474, 1.442695
    %v478 = vpow.pop %v477
    %v479 = vadd.f32 %v476, 1.0
    %v480 = vadd.f32 %v478, 1.0
    %v481 = vrcp.pop %v479
    %v482 = vmul.f32 1.0, %v481
    %v483 = vrcp.pop %v480
    %v484 = vmul.f32 1.0, %v483
    %v487 = vcombine.low %v482, %v484
    %489 = vst [vmem:[#allocation2] sm:$0xff] %v487
    // Predicated region
    $region38: #{tpu_custom_call.1} parent=1 // pred_check
      _
    $region39: #{tpu_custom_call.1} parent=1 // pred_check_branch
      %491 = sbr.rel (0) target = $region41
    $region40: #{tpu_custom_call.1} parent=1 // pred_region
      %s493 = ssub.s32 128, 128
      %494 = vsyncadd [#allocation3], %s493
      %s496 = sshll.u32 [#allocation2], 4
      %s497 = int_to_ptr.vmem [resolvable:$true] %s496
      %499 = dma.vmem_to_hbm [thread:$0]  %s497, 128, %s9, [#allocation3]
    $region41: #{tpu_custom_call.1} parent=1 // pred_fallthru
      _
    // Predicated region
    $region42: #{tpu_custom_call.1} parent=1 // pred_check
      _
    $region43: #{tpu_custom_call.1} parent=1 // pred_check_branch
      %501 = sbr.rel (0) target = $region45
    $region44: #{tpu_custom_call.1} parent=1 // pred_region
      %502 = dma.done [#allocation3], 128
    $region45: #{tpu_custom_call.1} parent=1 // pred_fallthru
      _
    %503 = vsyncpa [#allocation3], 1

</llo_original>
